<compile_context>
chip_gen: v6e
topology: v6e:2x2x1
jax: 0.10.0
libtpu: 0.0.40
codegen_flags: <defaults>
</compile_context>

<pallas_src>
import functools

import jax
import jax.numpy as jnp
from jax import lax
from jax.experimental import pallas as pl
from jax.experimental.pallas import tpu as pltpu


def _patch_embed_kernel(x_ref, w_ref, b_ref, o_ref):
    """One M-tile of  y = x @ w + b.

    x_ref: (tm, K)  im2col patch rows (bf16/f32), K = C_in * p * p
    w_ref: (K, N)   weight pre-transposed in the wrapper (stationary operand,
                    N = emb on the lane axis -> no in-kernel XLU transpose)
    b_ref: (1, N)   bias, f32
    o_ref: (tm, N)
    """
    acc = jnp.dot(x_ref[...], w_ref[...], preferred_element_type=jnp.float32)
    acc = acc + b_ref[...]                       # f32 bias add before the cast
    o_ref[...] = acc.astype(o_ref.dtype)


def _choose_tile_m(M, max_tile_m):
    """Tile policy (v7x-aware).

    - M <= max_tile_m: one grid step. Splitting tiny problems only adds
      per-step serial-loop overhead (the grid is a loop, not a launch).
    - M  > max_tile_m: pick tm so the grid length is even and >= 2, so the
      "parallel" axis shards across both v7x TensorCores with balanced work.
    """
    max_tile_m = max(8, (max_tile_m // 8) * 8)
    if M <= max_tile_m:
        return M                                  # full-dim block is always legal
    steps = pl.cdiv(M, max_tile_m)
    if steps % 2:
        steps += 1
    tm = pl.cdiv(M, steps)
    return pl.cdiv(tm, 8) * 8                     # sublane-aligned block rows


def _patch_linear(x2d, w2d, b2d, out_dtype, *, max_tile_m):
    """y = x2d @ w2d + b2d, tiled along M with a pipelined grid."""
    M, K = x2d.shape
    N = w2d.shape[1]

    tm = _choose_tile_m(M, max_tile_m)
    grid = (pl.cdiv(M, tm),)

    x_bytes = M * K * jnp.dtype(x2d.dtype).itemsize
    w_bytes = K * N * jnp.dtype(w2d.dtype).itemsize
    o_bytes = M * N * jnp.dtype(out_dtype).itemsize
    cost = pl.CostEstimate(
        flops=2 * M * K * N,
        transcendentals=0,
        bytes_accessed=x_bytes + w_bytes + 4 * N + o_bytes,
    )

    return pl.pallas_call(
        _patch_embed_kernel,
        out_shape=jax.ShapeDtypeStruct((M, N), out_dtype),
        grid=grid,
        in_specs=[
            pl.BlockSpec((tm, K), lambda i: (i, 0)),   # M-tiled activations (pipelined)
            pl.BlockSpec((K, N), lambda i: (0, 0)),    # small (K,N) weight, resident
            pl.BlockSpec((1, N), lambda i: (0, 0)),    # bias
            # TODO(synk): pl.Buffered(1) single-buffering for the grid-invariant
            # weight/bias blocks would save ~112 KiB VMEM; skipped as a minor win.
        ],
        out_specs=pl.BlockSpec((tm, N), lambda i: (i, 0)),
        compiler_params=pltpu.CompilerParams(
            dimension_semantics=("parallel",),          # 2-TC sharding on v7x when grid > 1
            # Let XLA fuse the im2col transpose/reshape producer of x2d into the
            # pallas_call input instead of materializing a standalone HBM pass.
            allow_input_fusion=[True, False, False],
        ),
        cost_estimate=cost,
    )(x2d, w2d, b2d)


def conv_embedding_forward(x, weight, bias, *, patch_size=4, max_tile_m=2048,
                           compute_dtype=jnp.bfloat16, out_dtype=None):
    """Exact semantics of ConvEmbedding.forward.

    x:      (B, C_in, H, W)          with C_in = 14 in the module
    weight: (emb, C_in, p, p)        PyTorch Conv2d weight layout
    bias:   (emb,)
    returns (B, (H//p)*(W//p), emb)  in out_dtype (defaults to x.dtype)
    """
    B, C, H, W = x.shape
    p = patch_size
    assert H % p == 0 and W % p == 0, "spatial dims must be divisible by patch_size"
    Hp, Wp = H // p, W // p
    emb = weight.shape[0]
    K = C * p * p
    out_dtype = x.dtype if out_dtype is None else out_dtype

    # Memory-bound kernel: bf16 inputs halve HBM traffic for the relayout and the
    # GEMM input DMA. Accumulation and bias add stay f32 inside the kernel.
    xc = x.astype(compute_dtype)
    wc = weight.astype(compute_dtype)

    # im2col for the stride==kernel conv: per-patch feature order (c, kh, kw)
    # matches weight.reshape(emb, C*p*p). The producer is eligible for fusion
    # into the pallas_call input via allow_input_fusion above.
    xp = xc.reshape(B, C, Hp, p, Wp, p)
    xp = jnp.transpose(xp, (0, 2, 4, 1, 3, 5))        # (B, Hp, Wp, C, p, p)
    x2d = xp.reshape(B * Hp * Wp, K)

    # One-time wrapper transpose to (K, N): the stationary MXU operand keeps
    # N = emb on the lane axis, and the kernel never re-transposes it per step.
    w2d = wc.reshape(emb, K).T                        # (K, emb)
    b2d = bias.astype(jnp.float32).reshape(1, emb)

    y2d = _patch_linear(x2d, w2d, b2d, out_dtype, max_tile_m=max_tile_m)
    return y2d.reshape(B, Hp * Wp, emb)               # == 'b c h w -> b (h w) c'


if __name__ == "__main__":
    key = jax.random.PRNGKey(0)
    k_x, k_w, k_b = jax.random.split(key, 3)

    # 14 input channels per the module; emb chosen as a 128 multiple so the
    # output lane dimension is dense (unmasked vector stores).
    B, C_in, H, W = 2, 14, 64, 64
    patch, emb = 4, 128
    Hp, Wp = H // patch, W // patch

    x = jax.random.normal(k_x, (B, C_in, H, W), dtype=jnp.float32)
    weight = 0.02 * jax.random.normal(k_w, (emb, C_in, patch, patch), dtype=jnp.float32)
    bias = 0.01 * jax.random.normal(k_b, (emb,), dtype=jnp.float32)

    # Default tile policy: M = 512 <= 2048 -> single grid step (no per-step overhead).
    fwd = jax.jit(functools.partial(conv_embedding_forward, patch_size=patch))
    out = jax.block_until_ready(fwd(x, weight, bias))
    assert out.shape == (B, Hp * Wp, emb), out.shape

    # Reference: XLA conv on the same bf16-rounded inputs (the kernel multiplies
    # bf16 values and accumulates in f32), then 'b c h w -> b (h w) c'.
    x_r = x.astype(jnp.bfloat16).astype(jnp.float32)
    w_r = weight.astype(jnp.bfloat16).astype(jnp.float32)
    ref = lax.conv_general_dilated(
        x_r, w_r, window_strides=(patch, patch), padding="VALID",
        dimension_numbers=("NCHW", "OIHW", "NCHW"),
        precision=lax.Precision.HIGHEST) + bias[None, :, None, None]
    ref = jnp.transpose(ref, (0, 2, 3, 1)).reshape(B, Hp * Wp, emb)

    assert jnp.allclose(out, ref, atol=2e-3, rtol=2e-3), \
        float(jnp.max(jnp.abs(out - ref)))

    # Also exercise the multi-tile pipelined path (forces a 4-step "parallel" grid).
    fwd_tiled = jax.jit(functools.partial(conv_embedding_forward,
                                          patch_size=patch, max_tile_m=128))
    out_tiled = jax.block_until_ready(fwd_tiled(x, weight, bias))
    assert jnp.allclose(out_tiled, ref, atol=2e-3, rtol=2e-3), \
        float(jnp.max(jnp.abs(out_tiled - ref)))

    print("KERNEL_OK")
</pallas_src>

<mosaic_0001>
module attributes {stable_mosaic.version = 11 : i64} {
  func.func @_patch_embed_kernel(%arg0: i32, %arg1: memref<512x224xbf16, #tpu.memory_space<vmem>>, %arg2: memref<224x128xbf16, #tpu.memory_space<vmem>>, %arg3: memref<1x128xf32, #tpu.memory_space<vmem>>, %arg4: memref<512x128xf32, #tpu.memory_space<vmem>>) attributes {dimension_semantics = [#tpu.dimension_semantics<parallel>], iteration_bounds = array<i64: 1>, scalar_prefetch = 0 : i64, scratch_operands = 0 : i64, tpu.core_type = #tpu.core_type<tc>, window_params = [{transform_indices = @transform_0, window_bounds = array<i64: 512, 224>}, {pipeline_mode = #tpu.pipeline_mode<synchronous>, transform_indices = @transform_1, window_bounds = array<i64: 224, 128>}, {pipeline_mode = #tpu.pipeline_mode<synchronous>, transform_indices = @transform_2, window_bounds = array<i64: 1, 128>}, {transform_indices = @transform_3, window_bounds = array<i64: 512, 128>}]} {
    %c0 = arith.constant 0 : index
    %c0_0 = arith.constant 0 : index
    %0 = vector.load %arg1[%c0, %c0_0] : memref<512x224xbf16, #tpu.memory_space<vmem>>, vector<512x224xbf16>
    %c0_1 = arith.constant 0 : index
    %c0_2 = arith.constant 0 : index
    %1 = vector.load %arg2[%c0_1, %c0_2] : memref<224x128xbf16, #tpu.memory_space<vmem>>, vector<224x128xbf16>
    %cst = arith.constant dense<0.000000e+00> : vector<512x128xf32>
    %2 = tpu.matmul %0, %1, %cst {dimension_numbers = #tpu.dot_dimension_numbers<[1], [0], [0], [1], [0, 0, 1, 1], [], []>} : vector<512x224xbf16>, vector<224x128xbf16>, vector<512x128xf32> -> vector<512x128xf32>
    %c0_3 = arith.constant 0 : index
    %c0_4 = arith.constant 0 : index
    %3 = vector.load %arg3[%c0_3, %c0_4] : memref<1x128xf32, #tpu.memory_space<vmem>>, vector<1x128xf32>
    %4 = vector.broadcast %3 : vector<1x128xf32> to vector<512x128xf32>
    %5 = arith.addf %2, %4 : vector<512x128xf32>
    %c0_5 = arith.constant 0 : index
    %c0_6 = arith.constant 0 : index
    %6 = vector.load %arg4[%c0_5, %c0_6] : memref<512x128xf32, #tpu.memory_space<vmem>>, vector<512x128xf32>
    tpu.vector_store %arg4[%c0_5, %c0_6], %5 {strides = array<i32>} : memref<512x128xf32, #tpu.memory_space<vmem>>, vector<512x128xf32>,
    return
  }
  func.func @transform_0(%arg0: i32) -> (i32, i32) {
    %c0_i32 = arith.constant 0 : i32
    %c0_i32_0 = arith.constant 0 : i32
    return %arg0, %c0_i32 : i32, i32
  }
  func.func @transform_1(%arg0: i32) -> (i32, i32) {
    %c0_i32 = arith.constant 0 : i32
    %c0_i32_0 = arith.constant 0 : i32
    %c0_i32_1 = arith.constant 0 : i32
    return %c0_i32, %c0_i32_0 : i32, i32
  }
  func.func @transform_2(%arg0: i32) -> (i32, i32) {
    %c0_i32 = arith.constant 0 : i32
    %c0_i32_0 = arith.constant 0 : i32
    %c0_i32_1 = arith.constant 0 : i32
    return %c0_i32, %c0_i32_0 : i32, i32
  }
  func.func @transform_3(%arg0: i32) -> (i32, i32) {
    %c0_i32 = arith.constant 0 : i32
    %c0_i32_0 = arith.constant 0 : i32
    return %arg0, %c0_i32 : i32, i32
  }
}

</mosaic_0001>

<llo_original>
// kernel: conv_embedding_forward.1
$region0: #{conv_embedding_forward.1}
  #allocation0 [shape = 'u32[]', space=smem, size = 0x4, offset = 0x4, fixed_abs, tag = 'smem constant byte address 0x4 - core index']
  #allocation1 [shape = 'u32[144,128]{1,0:T(1,128)}', space=vmem, size = 0x12000, scoped, tag = 'internal scratch']
  %s0 = inlined_call_operand.vmem [shape: bf16[512,224], index: 0, kind: input, shape index: {}]
  %s1 = inlined_call_operand.vmem [shape: bf16[224,128], index: 1, kind: input, shape index: {}]
  %s2 = inlined_call_operand.vmem [shape: f32[1,128], index: 2, kind: input, shape index: {}]
  %s3 = inlined_call_operand.hbm [shape: f32[512,128], index: 3, kind: output, shape index: {}]
  %s4 = sld [smem:[#allocation0]]
  $region22: #{conv_embedding_forward.1} parent=0
    _
  %s6 = ssub.s32 1, %s4
  %s7 = scalar_select 0, %s6, %s4
  $region1: #{conv_embedding_forward.1} parent=0
    #allocation2 [shape = 'u8[262144]{0}', space=vmem, size = 0x40000, scoped, tag = 'output window, operand 0, single buffered']
    #allocation3 [shape = 's32[1]{0}', space=sflag, size = 0x4, scoped, tag = 'scoped memory for conv_embedding_forward.1']
    %8 = vsyncpa [#allocation3], 0
    // Predicated region
    $region2: #{conv_embedding_forward.1} parent=1 // pred_check
      _
    $region3: #{conv_embedding_forward.1} parent=1 // pred_check_branch
      %10 = sbr.rel (0) target = $region5
    $region4: #{conv_embedding_forward.1} parent=1 // pred_region
      _
    $region5: #{conv_embedding_forward.1} parent=1 // pred_fallthru
      _
    // Predicated region
    $region6: #{conv_embedding_forward.1} parent=1 // pred_check
      _
    $region7: #{conv_embedding_forward.1} parent=1 // pred_check_branch
      %12 = sbr.rel (0) target = $region9
    $region8: #{conv_embedding_forward.1} parent=1 // pred_region
      _
    $region9: #{conv_embedding_forward.1} parent=1 // pred_fallthru
      _
    // Predicated region
    $region10: #{conv_embedding_forward.1} parent=1 // pred_check
      _
    $region11: #{conv_embedding_forward.1} parent=1 // pred_check_branch
      %14 = sbr.rel (0) target = $region13
    $region12: #{conv_embedding_forward.1} parent=1 // pred_region
      _
    $region13: #{conv_embedding_forward.1} parent=1 // pred_fallthru
      _
    %v16 = vld [vmem:[%s0] sm:$0xff]
    %v17 = vld [vmem:[%s0 + $0x8] sm:$0xff]
    %v18 = vld [vmem:[%s0 + $0x10] sm:$0xff]
    %v19 = vld [vmem:[%s0 + $0x18] sm:$0xff]
    %v20 = vld [vmem:[%s0 + $0x20] sm:$0xff]
    %v21 = vld [vmem:[%s0 + $0x28] sm:$0xff]
    %v22 = vld [vmem:[%s0 + $0x30] sm:$0xff]
    %v23 = vld [vmem:[%s0 + $0x38] sm:$0xff]
    %v24 = vld [vmem:[%s0 + $0x40] sm:$0xff]
    %v25 = vld [vmem:[%s0 + $0x48] sm:$0xff]
    %v26 = vld [vmem:[%s0 + $0x50] sm:$0xff]
    %v27 = vld [vmem:[%s0 + $0x58] sm:$0xff]
    %v28 = vld [vmem:[%s0 + $0x60] sm:$0xff]
    %v29 = vld [vmem:[%s0 + $0x68] sm:$0xff]
    %v30 = vld [vmem:[%s0 + $0x70] sm:$0xff]
    %v31 = vld [vmem:[%s0 + $0x78] sm:$0xff]
    %v32 = vld [vmem:[%s0 + $0x80] sm:$0xff]
    %v33 = vld [vmem:[%s0 + $0x88] sm:$0xff]
    %v34 = vld [vmem:[%s0 + $0x90] sm:$0xff]
    %v35 = vld [vmem:[%s0 + $0x98] sm:$0xff]
    %v36 = vld [vmem:[%s0 + $0xa0] sm:$0xff]
    %v37 = vld [vmem:[%s0 + $0xa8] sm:$0xff]
    %v38 = vld [vmem:[%s0 + $0xb0] sm:$0xff]
    %v39 = vld [vmem:[%s0 + $0xb8] sm:$0xff]
    %v40 = vld [vmem:[%s0 + $0xc0] sm:$0xff]
    %v41 = vld [vmem:[%s0 + $0xc8] sm:$0xff]
    %v42 = vld [vmem:[%s0 + $0xd0] sm:$0xff]
    %v43 = vld [vmem:[%s0 + $0xd8] sm:$0xff]
    %v44 = vld [vmem:[%s0 + $0xe0] sm:$0xff]
    %v45 = vld [vmem:[%s0 + $0xe8] sm:$0xff]
    %v46 = vld [vmem:[%s0 + $0xf0] sm:$0xff]
    %v47 = vld [vmem:[%s0 + $0xf8] sm:$0xff]
    %v48 = vld [vmem:[%s0 + $0x100] sm:$0xff]
    %v49 = vld [vmem:[%s0 + $0x108] sm:$0xff]
    %v50 = vld [vmem:[%s0 + $0x110] sm:$0xff]
    %v51 = vld [vmem:[%s0 + $0x118] sm:$0xff]
    %v52 = vld [vmem:[%s0 + $0x120] sm:$0xff]
    %v53 = vld [vmem:[%s0 + $0x128] sm:$0xff]
    %v54 = vld [vmem:[%s0 + $0x130] sm:$0xff]
    %v55 = vld [vmem:[%s0 + $0x138] sm:$0xff]
    %v56 = vld [vmem:[%s0 + $0x140] sm:$0xff]
    %v57 = vld [vmem:[%s0 + $0x148] sm:$0xff]
    %v58 = vld [vmem:[%s0 + $0x150] sm:$0xff]
    %v59 = vld [vmem:[%s0 + $0x158] sm:$0xff]
    %v60 = vld [vmem:[%s0 + $0x160] sm:$0xff]
    %v61 = vld [vmem:[%s0 + $0x168] sm:$0xff]
    %v62 = vld [vmem:[%s0 + $0x170] sm:$0xff]
    %v63 = vld [vmem:[%s0 + $0x178] sm:$0xff]
    %v64 = vld [vmem:[%s0 + $0x180] sm:$0xff]
    %v65 = vld [vmem:[%s0 + $0x188] sm:$0xff]
    %v66 = vld [vmem:[%s0 + $0x190] sm:$0xff]
    %v67 = vld [vmem:[%s0 + $0x198] sm:$0xff]
    %v68 = vld [vmem:[%s0 + $0x1a0] sm:$0xff]
    %v69 = vld [vmem:[%s0 + $0x1a8] sm:$0xff]
    %v70 = vld [vmem:[%s0 + $0x1b0] sm:$0xff]
    %v71 = vld [vmem:[%s0 + $0x1b8] sm:$0xff]
    %v72 = vld [vmem:[%s0 + $0x1c0] sm:$0xff]
    %v73 = vld [vmem:[%s0 + $0x1c8] sm:$0xff]
    %v74 = vld [vmem:[%s0 + $0x1d0] sm:$0xff]
    %v75 = vld [vmem:[%s0 + $0x1d8] sm:$0xff]
    %v76 = vld [vmem:[%s0 + $0x1e0] sm:$0xff]
    %v77 = vld [vmem:[%s0 + $0x1e8] sm:$0xff]
    %v78 = vld [vmem:[%s0 + $0x1f0] sm:$0xff]
    %v79 = vld [vmem:[%s0 + $0x1f8] sm:$0xff]
    %v80 = vld [vmem:[%s1] sm:$0xf]
    %v81 = vld [vmem:[%s1 + $0x4] sm:$0xf]
    %v82 = vld [vmem:[%s1 + $0x8] sm:$0xf]
    %v83 = vld [vmem:[%s1 + $0xc] sm:$0xf]
    %v84 = vld [vmem:[%s1 + $0x10] sm:$0xf]
    %v85 = vld [vmem:[%s1 + $0x14] sm:$0xf]
    %v86 = vld [vmem:[%s1 + $0x18] sm:$0xf]
    %v87 = vld [vmem:[%s1 + $0x1c] sm:$0xf]
    %v88 = vld [vmem:[%s1 + $0x20] sm:$0xf]
    %v89 = vld [vmem:[%s1 + $0x24] sm:$0xf]
    %v90 = vld [vmem:[%s1 + $0x28] sm:$0xf]
    %v91 = vld [vmem:[%s1 + $0x2c] sm:$0xf]
    %v92 = vld [vmem:[%s1 + $0x30] sm:$0xf]
    %v93 = vld [vmem:[%s1 + $0x34] sm:$0xf]
    %v94 = vld [vmem:[%s1 + $0x38] sm:$0xf]
    %v95 = vld [vmem:[%s1 + $0x3c] sm:$0xf]
    %v96 = vld [vmem:[%s1 + $0x40] sm:$0xf]
    %v97 = vld [vmem:[%s1 + $0x44] sm:$0xf]
    %v98 = vld [vmem:[%s1 + $0x48] sm:$0xf]
    %v99 = vld [vmem:[%s1 + $0x4c] sm:$0xf]
    %v100 = vld [vmem:[%s1 + $0x50] sm:$0xf]
    %v101 = vld [vmem:[%s1 + $0x54] sm:$0xf]
    %v102 = vld [vmem:[%s1 + $0x58] sm:$0xf]
    %v103 = vld [vmem:[%s1 + $0x5c] sm:$0xf]
    %v104 = vld [vmem:[%s1 + $0x60] sm:$0xf]
    %v105 = vld [vmem:[%s1 + $0x64] sm:$0xf]
    %v106 = vld [vmem:[%s1 + $0x68] sm:$0xf]
    %v107 = vld [vmem:[%s1 + $0x6c] sm:$0xf]
    %v108 = vld [vmem:[%s2] sm:$0x1]
    %v110 = vlaneseq
    %v111 = vshrl.u32 %v110, 7
    %v112 = vsub.s32 0, %v111
    %v113 = vrot.slane %v108, %v112
    %v179 = vunpack.c.l.b16 %v16
    %v180 = vunpack.c.h.b16 %v16
    %v181 = vunpack.c.l.b16 %v17
    %v182 = vunpack.c.h.b16 %v17
    %v183 = vunpack.c.l.b16 %v18
    %v184 = vunpack.c.h.b16 %v18
    %v185 = vunpack.c.l.b16 %v19
    %v186 = vunpack.c.h.b16 %v19
    %v187 = vunpack.c.l.b16 %v20
    %v188 = vunpack.c.h.b16 %v20
    %v189 = vunpack.c.l.b16 %v21
    %v190 = vunpack.c.h.b16 %v21
    %v191 = vunpack.c.l.b16 %v22
    %v192 = vunpack.c.h.b16 %v22
    %v193 = vunpack.c.l.b16 %v23
    %v194 = vunpack.c.h.b16 %v23
    %v195 = vunpack.c.l.b16 %v24
    %v196 = vunpack.c.h.b16 %v24
    %v197 = vunpack.c.l.b16 %v25
    %v198 = vunpack.c.h.b16 %v25
    %v199 = vunpack.c.l.b16 %v26
    %v200 = vunpack.c.h.b16 %v26
    %v201 = vunpack.c.l.b16 %v27
    %v202 = vunpack.c.h.b16 %v27
    %v203 = vunpack.c.l.b16 %v28
    %v204 = vunpack.c.h.b16 %v28
    %v205 = vunpack.c.l.b16 %v29
    %v206 = vunpack.c.h.b16 %v29
    %v207 = vunpack.c.l.b16 %v30
    %v208 = vunpack.c.h.b16 %v30
    %v209 = vunpack.c.l.b16 %v31
    %v210 = vunpack.c.h.b16 %v31
    %v211 = vunpack.c.l.b16 %v32
    %v212 = vunpack.c.h.b16 %v32
    %v213 = vunpack.c.l.b16 %v33
    %v214 = vunpack.c.h.b16 %v33
    %v215 = vunpack.c.l.b16 %v34
    %v216 = vunpack.c.h.b16 %v34
    %v217 = vunpack.c.l.b16 %v35
    %v218 = vunpack.c.h.b16 %v35
    %v219 = vunpack.c.l.b16 %v36
    %v220 = vunpack.c.h.b16 %v36
    %v221 = vunpack.c.l.b16 %v37
    %v222 = vunpack.c.h.b16 %v37
    %v223 = vunpack.c.l.b16 %v38
    %v224 = vunpack.c.h.b16 %v38
    %v225 = vunpack.c.l.b16 %v39
    %v226 = vunpack.c.h.b16 %v39
    %v227 = vunpack.c.l.b16 %v40
    %v228 = vunpack.c.h.b16 %v40
    %v229 = vunpack.c.l.b16 %v41
    %v230 = vunpack.c.h.b16 %v41
    %v231 = vunpack.c.l.b16 %v42
    %v232 = vunpack.c.h.b16 %v42
    %v233 = vunpack.c.l.b16 %v43
    %v234 = vunpack.c.h.b16 %v43
    %v235 = vunpack.c.l.b16 %v44
    %v236 = vunpack.c.h.b16 %v44
    %v237 = vunpack.c.l.b16 %v45
    %v238 = vunpack.c.h.b16 %v45
    %v239 = vunpack.c.l.b16 %v46
    %v240 = vunpack.c.h.b16 %v46
    %v241 = vunpack.c.l.b16 %v47
    %v242 = vunpack.c.h.b16 %v47
    %v243 = vunpack.c.l.b16 %v48
    %v244 = vunpack.c.h.b16 %v48
    %v245 = vunpack.c.l.b16 %v49
    %v246 = vunpack.c.h.b16 %v49
    %v247 = vunpack.c.l.b16 %v50
    %v248 = vunpack.c.h.b16 %v50
    %v249 = vunpack.c.l.b16 %v51
    %v250 = vunpack.c.h.b16 %v51
    %v251 = vunpack.c.l.b16 %v52
    %v252 = vunpack.c.h.b16 %v52
    %v253 = vunpack.c.l.b16 %v53
    %v254 = vunpack.c.h.b16 %v53
    %v255 = vunpack.c.l.b16 %v54
    %v256 = vunpack.c.h.b16 %v54
    %v257 = vunpack.c.l.b16 %v55
    %v258 = vunpack.c.h.b16 %v55
    %v259 = vunpack.c.l.b16 %v56
    %v260 = vunpack.c.h.b16 %v56
    %v261 = vunpack.c.l.b16 %v57
    %v262 = vunpack.c.h.b16 %v57
    %v263 = vunpack.c.l.b16 %v58
    %v264 = vunpack.c.h.b16 %v58
    %v265 = vunpack.c.l.b16 %v59
    %v266 = vunpack.c.h.b16 %v59
    %v267 = vunpack.c.l.b16 %v60
    %v268 = vunpack.c.h.b16 %v60
    %v269 = vunpack.c.l.b16 %v61
    %v270 = vunpack.c.h.b16 %v61
    %v271 = vunpack.c.l.b16 %v62
    %v272 = vunpack.c.h.b16 %v62
    %v273 = vunpack.c.l.b16 %v63
    %v274 = vunpack.c.h.b16 %v63
    %v275 = vunpack.c.l.b16 %v64
    %v276 = vunpack.c.h.b16 %v64
    %v277 = vunpack.c.l.b16 %v65
    %v278 = vunpack.c.h.b16 %v65
    %v279 = vunpack.c.l.b16 %v66
    %v280 = vunpack.c.h.b16 %v66
    %v281 = vunpack.c.l.b16 %v67
    %v282 = vunpack.c.h.b16 %v67
    %v283 = vunpack.c.l.b16 %v68
    %v284 = vunpack.c.h.b16 %v68
    %v285 = vunpack.c.l.b16 %v69
    %v286 = vunpack.c.h.b16 %v69
    %v287 = vunpack.c.l.b16 %v70
    %v288 = vunpack.c.h.b16 %v70
    %v289 = vunpack.c.l.b16 %v71
    %v290 = vunpack.c.h.b16 %v71
    %v291 = vunpack.c.l.b16 %v72
    %v292 = vunpack.c.h.b16 %v72
    %v293 = vunpack.c.l.b16 %v73
    %v294 = vunpack.c.h.b16 %v73
    %v295 = vunpack.c.l.b16 %v74
    %v296 = vunpack.c.h.b16 %v74
    %v297 = vunpack.c.l.b16 %v75
    %v298 = vunpack.c.h.b16 %v75
    %v299 = vunpack.c.l.b16 %v76
    %v300 = vunpack.c.h.b16 %v76
    %v301 = vunpack.c.l.b16 %v77
    %v302 = vunpack.c.h.b16 %v77
    %v303 = vunpack.c.l.b16 %v78
    %v304 = vunpack.c.h.b16 %v78
    %v305 = vunpack.c.l.b16 %v79
    %v306 = vunpack.c.h.b16 %v79
    %v307 = vpack.c.b16 %v181, %v179
    %v308 = vpack.c.b16 %v182, %v180
    %v309 = vpack.c.b16 %v185, %v183
    %v310 = vpack.c.b16 %v186, %v184
    %v311 = vpack.c.b16 %v189, %v187
    %v312 = vpack.c.b16 %v190, %v188
    %v313 = vpack.c.b16 %v193, %v191
    %v314 = vpack.c.b16 %v194, %v192
    %v315 = vpack.c.b16 %v197, %v195
    %v316 = vpack.c.b16 %v198, %v196
    %v317 = vpack.c.b16 %v201, %v199
    %v318 = vpack.c.b16 %v202, %v200
    %v319 = vpack.c.b16 %v205, %v203
    %v320 = vpack.c.b16 %v206, %v204
    %v321 = vpack.c.b16 %v209, %v207
    %v322 = vpack.c.b16 %v210, %v208
    %v323 = vpack.c.b16 %v213, %v211
    %v324 = vpack.c.b16 %v214, %v212
    %v325 = vpack.c.b16 %v217, %v215
    %v326 = vpack.c.b16 %v218, %v216
    %v327 = vpack.c.b16 %v221, %v219
    %v328 = vpack.c.b16 %v222, %v220
    %v329 = vpack.c.b16 %v225, %v223
    %v330 = vpack.c.b16 %v226, %v224
    %v331 = vpack.c.b16 %v229, %v227
    %v332 = vpack.c.b16 %v230, %v228
    %v333 = vpack.c.b16 %v233, %v231
    %v334 = vpack.c.b16 %v234, %v232
    %v335 = vpack.c.b16 %v237, %v235
    %v336 = vpack.c.b16 %v238, %v236
    %v337 = vpack.c.b16 %v241, %v239
    %v338 = vpack.c.b16 %v242, %v240
    %v339 = vpack.c.b16 %v245, %v243
    %v340 = vpack.c.b16 %v246, %v244
    %v341 = vpack.c.b16 %v249, %v247
    %v342 = vpack.c.b16 %v250, %v248
    %v343 = vpack.c.b16 %v253, %v251
    %v344 = vpack.c.b16 %v254, %v252
    %v345 = vpack.c.b16 %v257, %v255
    %v346 = vpack.c.b16 %v258, %v256
    %v347 = vpack.c.b16 %v261, %v259
    %v348 = vpack.c.b16 %v262, %v260
    %v349 = vpack.c.b16 %v265, %v263
    %v350 = vpack.c.b16 %v266, %v264
    %v351 = vpack.c.b16 %v269, %v267
    %v352 = vpack.c.b16 %v270, %v268
    %v353 = vpack.c.b16 %v273, %v271
    %v354 = vpack.c.b16 %v274, %v272
    %v355 = vpack.c.b16 %v277, %v275
    %v356 = vpack.c.b16 %v278, %v276
    %v357 = vpack.c.b16 %v281, %v279
    %v358 = vpack.c.b16 %v282, %v280
    %v359 = vpack.c.b16 %v285, %v283
    %v360 = vpack.c.b16 %v286, %v284
    %v361 = vpack.c.b16 %v289, %v287
    %v362 = vpack.c.b16 %v290, %v288
    %v363 = vpack.c.b16 %v293, %v291
    %v364 = vpack.c.b16 %v294, %v292
    %v365 = vpack.c.b16 %v297, %v295
    %v366 = vpack.c.b16 %v298, %v296
    %v367 = vpack.c.b16 %v301, %v299
    %v368 = vpack.c.b16 %v302, %v300
    %v369 = vpack.c.b16 %v305, %v303
    %v370 = vpack.c.b16 %v306, %v304
    %v431 = vunpack.c.l.b16 %v80
    %v432 = vunpack.c.l.b16 %v81
    %v433 = vunpack.c.l.b16 %v82
    %v434 = vunpack.c.l.b16 %v83
    %v435 = vunpack.c.l.b16 %v84
    %v436 = vunpack.c.l.b16 %v85
    %v437 = vunpack.c.l.b16 %v86
    %v438 = vunpack.c.l.b16 %v87
    %v439 = vunpack.c.l.b16 %v88
    %v440 = vunpack.c.l.b16 %v89
    %v441 = vunpack.c.l.b16 %v90
    %v442 = vunpack.c.l.b16 %v91
    %v443 = vunpack.c.l.b16 %v92
    %v444 = vunpack.c.l.b16 %v93
    %v445 = vunpack.c.l.b16 %v94
    %v446 = vunpack.c.l.b16 %v95
    %v447 = vunpack.c.l.b16 %v96
    %v448 = vunpack.c.l.b16 %v97
    %v449 = vunpack.c.l.b16 %v98
    %v450 = vunpack.c.l.b16 %v99
    %v451 = vunpack.c.l.b16 %v100
    %v452 = vunpack.c.l.b16 %v101
    %v453 = vunpack.c.l.b16 %v102
    %v454 = vunpack.c.l.b16 %v103
    %v455 = vunpack.c.l.b16 %v104
    %v456 = vunpack.c.l.b16 %v105
    %v457 = vunpack.c.l.b16 %v106
    %v458 = vunpack.c.l.b16 %v107
    %v459 = vpack.c.b16 %v432, %v431
    %v460 = vpack.c.b16 %v434, %v433
    %v461 = vpack.c.b16 %v436, %v435
    %v462 = vpack.c.b16 %v438, %v437
    %v463 = vpack.c.b16 %v440, %v439
    %v464 = vpack.c.b16 %v442, %v441
    %v465 = vpack.c.b16 %v444, %v443
    %v466 = vpack.c.b16 %v446, %v445
    %v467 = vpack.c.b16 %v448, %v447
    %v468 = vpack.c.b16 %v450, %v449
    %v469 = vpack.c.b16 %v452, %v451
    %v470 = vpack.c.b16 %v454, %v453
    %v471 = vpack.c.b16 %v456, %v455
    %v472 = vpack.c.b16 %v458, %v457
    %vm487 = vcmask 785408
    %v489 = vsel %vm487, %v308, 0
    %v492 = vsel %vm487, %v310, 0
    %v495 = vsel %vm487, %v312, 0
    %v498 = vsel %vm487, %v314, 0
    %v501 = vsel %vm487, %v316, 0
    %v504 = vsel %vm487, %v318, 0
    %v507 = vsel %vm487, %v320, 0
    %v510 = vsel %vm487, %v322, 0
    %v513 = vsel %vm487, %v324, 0
    %v516 = vsel %vm487, %v326, 0
    %v519 = vsel %vm487, %v328, 0
    %v522 = vsel %vm487, %v330, 0
    %v525 = vsel %vm487, %v332, 0
    %v528 = vsel %vm487, %v334, 0
    %v531 = vsel %vm487, %v336, 0
    %v534 = vsel %vm487, %v338, 0
    %v537 = vsel %vm487, %v340, 0
    %v540 = vsel %vm487, %v342, 0
    %v543 = vsel %vm487, %v344, 0
    %v546 = vsel %vm487, %v346, 0
    %v549 = vsel %vm487, %v348, 0
    %v552 = vsel %vm487, %v350, 0
    %v555 = vsel %vm487, %v352, 0
    %v558 = vsel %vm487, %v354, 0
    %v561 = vsel %vm487, %v356, 0
    %v564 = vsel %vm487, %v358, 0
    %v567 = vsel %vm487, %v360, 0
    %v570 = vsel %vm487, %v362, 0
    %v573 = vsel %vm487, %v364, 0
    %v576 = vsel %vm487, %v366, 0
    %v579 = vsel %vm487, %v368, 0
    %v582 = vsel %vm487, %v370, 0
    %584 = vmatprep.subr.bf16.mxu0 0
    %585 = vmatpush1.bf16.msra.mxu0 %v466
    %586 = vmatprep.subr.bf16.mxu0 0
    %587 = vmatpush1.bf16.msra.mxu0 %v465
    %588 = vmatprep.subr.bf16.mxu0 0
    %589 = vmatpush1.bf16.msra.mxu0 %v464
    %590 = vmatprep.subr.bf16.mxu0 0
    %591 = vmatpush1.bf16.msra.mxu0 %v463
    %592 = vmatprep.subr.bf16.mxu0 0
    %593 = vmatpush1.bf16.msra.mxu0 %v462
    %594 = vmatprep.subr.bf16.mxu0 0
    %595 = vmatpush1.bf16.msra.mxu0 %v461
    %596 = vmatprep.subr.bf16.mxu0 0
    %597 = vmatpush1.bf16.msra.mxu0 %v460
    %598 = vmatprep.subr.bf16.mxu0 0
    %599 = vmatpush1.bf16.msra.mxu0 %v459
    %600 = vmatprep.subr.bf16.mxu0 0
    %601 = vmatpush2.bf16.msra.mxu0 0
    %602 = vmatprep.subr.bf16.mxu0 0
    %603 = vmatpush2.bf16.msra.mxu0 0
    %604 = vmatprep.subr.bf16.mxu0 0
    %605 = vmatpush2.bf16.msra.mxu0 %v472
    %606 = vmatprep.subr.bf16.mxu0 0
    %607 = vmatpush2.bf16.msra.mxu0 %v471
    %608 = vmatprep.subr.bf16.mxu0 0
    %609 = vmatpush2.bf16.msra.mxu0 %v470
    %610 = vmatprep.subr.bf16.mxu0 0
    %611 = vmatpush2.bf16.msra.mxu0 %v469
    %612 = vmatprep.subr.bf16.mxu0 0
    %613 = vmatpush2.bf16.msra.mxu0 %v468
    %614 = vmatprep.subr.bf16.mxu0 0
    %615 = vmatpush2.bf16.msra.mxu0 %v467
    %616 = vmatprep.mubr.bf16.mxu0 %v489
    %617 = vmatmul.mubr.bf16.gmra.mxu0 %v307
    %v618 = vpop.f32.mrf.mxu0
    %v619 = vadd.f32 %v113, %v618
    %v620 = vpop.f32.mrf.mxu0
    %v621 = vpop.f32.mrf.mxu0
    %v622 = vadd.f32 %v113, %v621
    %v623 = vpop.f32.mrf.mxu0
    %624 = vmatprep.mubr.bf16.mxu0 %v492
    %625 = vmatmul.mubr.bf16.gmra.mxu0 %v309
    %v626 = vpop.f32.mrf.mxu0
    %v627 = vadd.f32 %v113, %v626
    %v628 = vpop.f32.mrf.mxu0
    %v629 = vpop.f32.mrf.mxu0
    %v630 = vadd.f32 %v113, %v629
    %v631 = vpop.f32.mrf.mxu0
    %632 = vmatprep.mubr.bf16.mxu0 %v495
    %633 = vmatmul.mubr.bf16.gmra.mxu0 %v311
    %v634 = vpop.f32.mrf.mxu0
    %v635 = vadd.f32 %v113, %v634
    %v636 = vpop.f32.mrf.mxu0
    %v637 = vpop.f32.mrf.mxu0
    %v638 = vadd.f32 %v113, %v637
    %v639 = vpop.f32.mrf.mxu0
    %640 = vmatprep.mubr.bf16.mxu0 %v498
    %641 = vmatmul.mubr.bf16.gmra.mxu0 %v313
    %v642 = vpop.f32.mrf.mxu0
    %v643 = vadd.f32 %v113, %v642
    %v644 = vpop.f32.mrf.mxu0
    %v645 = vpop.f32.mrf.mxu0
    %v646 = vadd.f32 %v113, %v645
    %v647 = vpop.f32.mrf.mxu0
    %648 = vmatprep.mubr.bf16.mxu0 %v501
    %649 = vmatmul.mubr.bf16.gmra.mxu0 %v315
    %v650 = vpop.f32.mrf.mxu0
    %v651 = vadd.f32 %v113, %v650
    %v652 = vpop.f32.mrf.mxu0
    %v653 = vpop.f32.mrf.mxu0
    %v654 = vadd.f32 %v113, %v653
    %v655 = vpop.f32.mrf.mxu0
    %656 = vmatprep.mubr.bf16.mxu0 %v504
    %657 = vmatmul.mubr.bf16.gmra.mxu0 %v317
    %v658 = vpop.f32.mrf.mxu0
    %v659 = vadd.f32 %v113, %v658
    %v660 = vpop.f32.mrf.mxu0
    %v661 = vpop.f32.mrf.mxu0
    %v662 = vadd.f32 %v113, %v661
    %v663 = vpop.f32.mrf.mxu0
    %664 = vmatprep.mubr.bf16.mxu0 %v507
    %665 = vmatmul.mubr.bf16.gmra.mxu0 %v319
    %v666 = vpop.f32.mrf.mxu0
    %v667 = vadd.f32 %v113, %v666
    %v668 = vpop.f32.mrf.mxu0
    %v669 = vpop.f32.mrf.mxu0
    %v670 = vadd.f32 %v113, %v669
    %v671 = vpop.f32.mrf.mxu0
    %672 = vmatprep.mubr.bf16.mxu0 %v510
    %673 = vmatmul.mubr.bf16.gmra.mxu0 %v321
    %v674 = vpop.f32.mrf.mxu0
    %v675 = vadd.f32 %v113, %v674
    %v676 = vpop.f32.mrf.mxu0
    %v677 = vpop.f32.mrf.mxu0
    %v678 = vadd.f32 %v113, %v677
    %v679 = vpop.f32.mrf.mxu0
    %680 = vmatprep.mubr.bf16.mxu0 %v513
    %681 = vmatmul.mubr.bf16.gmra.mxu0 %v323
    %v682 = vpop.f32.mrf.mxu0
    %v683 = vadd.f32 %v113, %v682
    %v684 = vpop.f32.mrf.mxu0
    %v685 = vpop.f32.mrf.mxu0
    %v686 = vadd.f32 %v113, %v685
    %v687 = vpop.f32.mrf.mxu0
    %688 = vmatprep.mubr.bf16.mxu0 %v516
    %689 = vmatmul.mubr.bf16.gmra.mxu0 %v325
    %v690 = vpop.f32.mrf.mxu0
    %v691 = vadd.f32 %v113, %v690
    %v692 = vpop.f32.mrf.mxu0
    %v693 = vpop.f32.mrf.mxu0
    %v694 = vadd.f32 %v113, %v693
    %v695 = vpop.f32.mrf.mxu0
    %696 = vmatprep.mubr.bf16.mxu0 %v519
    %697 = vmatmul.mubr.bf16.gmra.mxu0 %v327
    %v698 = vpop.f32.mrf.mxu0
    %v699 = vadd.f32 %v113, %v698
    %v700 = vpop.f32.mrf.mxu0
    %v701 = vpop.f32.mrf.mxu0
    %v702 = vadd.f32 %v113, %v701
    %v703 = vpop.f32.mrf.mxu0
    %704 = vmatprep.mubr.bf16.mxu0 %v522
    %705 = vmatmul.mubr.bf16.gmra.mxu0 %v329
    %v706 = vpop.f32.mrf.mxu0
    %v707 = vadd.f32 %v113, %v706
    %v708 = vpop.f32.mrf.mxu0
    %v709 = vpop.f32.mrf.mxu0
    %v710 = vadd.f32 %v113, %v709
    %v711 = vpop.f32.mrf.mxu0
    %712 = vmatprep.mubr.bf16.mxu0 %v525
    %713 = vmatmul.mubr.bf16.gmra.mxu0 %v331
    %v714 = vpop.f32.mrf.mxu0
    %v715 = vadd.f32 %v113, %v714
    %v716 = vpop.f32.mrf.mxu0
    %v717 = vpop.f32.mrf.mxu0
    %v718 = vadd.f32 %v113, %v717
    %v719 = vpop.f32.mrf.mxu0
    %720 = vmatprep.mubr.bf16.mxu0 %v528
    %721 = vmatmul.mubr.bf16.gmra.mxu0 %v333
    %v722 = vpop.f32.mrf.mxu0
    %v723 = vadd.f32 %v113, %v722
    %v724 = vpop.f32.mrf.mxu0
    %v725 = vpop.f32.mrf.mxu0
    %v726 = vadd.f32 %v113, %v725
    %v727 = vpop.f32.mrf.mxu0
    %728 = vmatprep.mubr.bf16.mxu0 %v531
    %729 = vmatmul.mubr.bf16.gmra.mxu0 %v335
    %v730 = vpop.f32.mrf.mxu0
    %v731 = vadd.f32 %v113, %v730
    %v732 = vpop.f32.mrf.mxu0
    %v733 = vpop.f32.mrf.mxu0
    %v734 = vadd.f32 %v113, %v733
    %v735 = vpop.f32.mrf.mxu0
    %736 = vmatprep.mubr.bf16.mxu0 %v534
    %737 = vmatmul.mubr.bf16.gmra.mxu0 %v337
    %v738 = vpop.f32.mrf.mxu0
    %v739 = vadd.f32 %v113, %v738
    %v740 = vpop.f32.mrf.mxu0
    %v741 = vpop.f32.mrf.mxu0
    %v742 = vadd.f32 %v113, %v741
    %v743 = vpop.f32.mrf.mxu0
    %744 = vmatprep.mubr.bf16.mxu0 %v537
    %745 = vmatmul.mubr.bf16.gmra.mxu0 %v339
    %v746 = vpop.f32.mrf.mxu0
    %v747 = vadd.f32 %v113, %v746
    %v748 = vpop.f32.mrf.mxu0
    %v749 = vpop.f32.mrf.mxu0
    %v750 = vadd.f32 %v113, %v749
    %v751 = vpop.f32.mrf.mxu0
    %752 = vmatprep.mubr.bf16.mxu0 %v540
    %753 = vmatmul.mubr.bf16.gmra.mxu0 %v341
    %v754 = vpop.f32.mrf.mxu0
    %v755 = vadd.f32 %v113, %v754
    %v756 = vpop.f32.mrf.mxu0
    %v757 = vpop.f32.mrf.mxu0
    %v758 = vadd.f32 %v113, %v757
    %v759 = vpop.f32.mrf.mxu0
    %760 = vmatprep.mubr.bf16.mxu0 %v543
    %761 = vmatmul.mubr.bf16.gmra.mxu0 %v343
    %v762 = vpop.f32.mrf.mxu0
    %v763 = vadd.f32 %v113, %v762
    %v764 = vpop.f32.mrf.mxu0
    %v765 = vpop.f32.mrf.mxu0
    %v766 = vadd.f32 %v113, %v765
    %v767 = vpop.f32.mrf.mxu0
    %768 = vmatprep.mubr.bf16.mxu0 %v546
    %769 = vmatmul.mubr.bf16.gmra.mxu0 %v345
    %v770 = vpop.f32.mrf.mxu0
    %v771 = vadd.f32 %v113, %v770
    %v772 = vpop.f32.mrf.mxu0
    %v773 = vpop.f32.mrf.mxu0
    %v774 = vadd.f32 %v113, %v773
    %v775 = vpop.f32.mrf.mxu0
    %776 = vmatprep.mubr.bf16.mxu0 %v549
    %777 = vmatmul.mubr.bf16.gmra.mxu0 %v347
    %v778 = vpop.f32.mrf.mxu0
    %v779 = vadd.f32 %v113, %v778
    %v780 = vpop.f32.mrf.mxu0
    %v781 = vpop.f32.mrf.mxu0
    %v782 = vadd.f32 %v113, %v781
    %v783 = vpop.f32.mrf.mxu0
    %784 = vmatprep.mubr.bf16.mxu0 %v552
    %785 = vmatmul.mubr.bf16.gmra.mxu0 %v349
    %v786 = vpop.f32.mrf.mxu0
    %v787 = vadd.f32 %v113, %v786
    %v788 = vpop.f32.mrf.mxu0
    %v789 = vpop.f32.mrf.mxu0
    %v790 = vadd.f32 %v113, %v789
    %v791 = vpop.f32.mrf.mxu0
    %792 = vmatprep.mubr.bf16.mxu0 %v555
    %793 = vmatmul.mubr.bf16.gmra.mxu0 %v351
    %v794 = vpop.f32.mrf.mxu0
    %v795 = vadd.f32 %v113, %v794
    %v796 = vpop.f32.mrf.mxu0
    %v797 = vpop.f32.mrf.mxu0
    %v798 = vadd.f32 %v113, %v797
    %v799 = vpop.f32.mrf.mxu0
    %800 = vmatprep.mubr.bf16.mxu0 %v558
    %801 = vmatmul.mubr.bf16.gmra.mxu0 %v353
    %v802 = vpop.f32.mrf.mxu0
    %v803 = vadd.f32 %v113, %v802
    %v804 = vpop.f32.mrf.mxu0
    %v805 = vpop.f32.mrf.mxu0
    %v806 = vadd.f32 %v113, %v805
    %v807 = vpop.f32.mrf.mxu0
    %808 = vmatprep.mubr.bf16.mxu0 %v561
    %809 = vmatmul.mubr.bf16.gmra.mxu0 %v355
    %v810 = vpop.f32.mrf.mxu0
    %v811 = vadd.f32 %v113, %v810
    %v812 = vpop.f32.mrf.mxu0
    %v813 = vpop.f32.mrf.mxu0
    %v814 = vadd.f32 %v113, %v813
    %v815 = vpop.f32.mrf.mxu0
    %816 = vmatprep.mubr.bf16.mxu0 %v564
    %817 = vmatmul.mubr.bf16.gmra.mxu0 %v357
    %v818 = vpop.f32.mrf.mxu0
    %v819 = vadd.f32 %v113, %v818
    %v820 = vpop.f32.mrf.mxu0
    %v821 = vpop.f32.mrf.mxu0
    %v822 = vadd.f32 %v113, %v821
    %v823 = vpop.f32.mrf.mxu0
    %824 = vmatprep.mubr.bf16.mxu0 %v567
    %825 = vmatmul.mubr.bf16.gmra.mxu0 %v359
    %v826 = vpop.f32.mrf.mxu0
    %v827 = vadd.f32 %v113, %v826
    %v828 = vpop.f32.mrf.mxu0
    %v829 = vpop.f32.mrf.mxu0
    %v830 = vadd.f32 %v113, %v829
    %v831 = vpop.f32.mrf.mxu0
    %832 = vmatprep.mubr.bf16.mxu0 %v570
    %833 = vmatmul.mubr.bf16.gmra.mxu0 %v361
    %v834 = vpop.f32.mrf.mxu0
    %v835 = vadd.f32 %v113, %v834
    %v836 = vpop.f32.mrf.mxu0
    %v837 = vpop.f32.mrf.mxu0
    %v838 = vadd.f32 %v113, %v837
    %v839 = vpop.f32.mrf.mxu0
    %840 = vmatprep.mubr.bf16.mxu0 %v573
    %841 = vmatmul.mubr.bf16.gmra.mxu0 %v363
    %v842 = vpop.f32.mrf.mxu0
    %v843 = vadd.f32 %v113, %v842
    %v844 = vpop.f32.mrf.mxu0
    %v845 = vpop.f32.mrf.mxu0
    %v846 = vadd.f32 %v113, %v845
    %v847 = vpop.f32.mrf.mxu0
    %848 = vmatprep.mubr.bf16.mxu0 %v576
    %849 = vmatmul.mubr.bf16.gmra.mxu0 %v365
    %v850 = vpop.f32.mrf.mxu0
    %v851 = vadd.f32 %v113, %v850
    %v852 = vpop.f32.mrf.mxu0
    %v853 = vpop.f32.mrf.mxu0
    %v854 = vadd.f32 %v113, %v853
    %v855 = vpop.f32.mrf.mxu0
    %856 = vmatprep.mubr.bf16.mxu0 %v579
    %857 = vmatmul.mubr.bf16.gmra.mxu0 %v367
    %v858 = vpop.f32.mrf.mxu0
    %v859 = vadd.f32 %v113, %v858
    %v860 = vpop.f32.mrf.mxu0
    %v861 = vpop.f32.mrf.mxu0
    %v862 = vadd.f32 %v113, %v861
    %v863 = vpop.f32.mrf.mxu0
    %864 = vmatprep.mubr.bf16.mxu0 %v582
    %865 = vmatmul.mubr.bf16.gmra.mxu0 %v369
    %v866 = vpop.f32.mrf.mxu0
    %v867 = vadd.f32 %v113, %v866
    %v868 = vpop.f32.mrf.mxu0
    %v869 = vpop.f32.mrf.mxu0
    %v870 = vadd.f32 %v113, %v869
    %v871 = vpop.f32.mrf.mxu0
    %872 = vdwg.mxu0
    %873 = vst [vmem:[#allocation2] sm:$0xff] %v619
    %874 = vst [vmem:[#allocation2 + $0x8] sm:$0xff] %v622
    %875 = vst [vmem:[#allocation2 + $0x10] sm:$0xff] %v627
    %876 = vst [vmem:[#allocation2 + $0x18] sm:$0xff] %v630
    %877 = vst [vmem:[#allocation2 + $0x20] sm:$0xff] %v635
    %878 = vst [vmem:[#allocation2 + $0x28] sm:$0xff] %v638
    %879 = vst [vmem:[#allocation2 + $0x30] sm:$0xff] %v643
    %880 = vst [vmem:[#allocation2 + $0x38] sm:$0xff] %v646
    %881 = vst [vmem:[#allocation2 + $0x40] sm:$0xff] %v651
    %882 = vst [vmem:[#allocation2 + $0x48] sm:$0xff] %v654
    %883 = vst [vmem:[#allocation2 + $0x50] sm:$0xff] %v659
    %884 = vst [vmem:[#allocation2 + $0x58] sm:$0xff] %v662
    %885 = vst [vmem:[#allocation2 + $0x60] sm:$0xff] %v667
    %886 = vst [vmem:[#allocation2 + $0x68] sm:$0xff] %v670
    %887 = vst [vmem:[#allocation2 + $0x70] sm:$0xff] %v675
    %888 = vst [vmem:[#allocation2 + $0x78] sm:$0xff] %v678
    %889 = vst [vmem:[#allocation2 + $0x80] sm:$0xff] %v683
    %890 = vst [vmem:[#allocation2 + $0x88] sm:$0xff] %v686
    %891 = vst [vmem:[#allocation2 + $0x90] sm:$0xff] %v691
    %892 = vst [vmem:[#allocation2 + $0x98] sm:$0xff] %v694
    %893 = vst [vmem:[#allocation2 + $0xa0] sm:$0xff] %v699
    %894 = vst [vmem:[#allocation2 + $0xa8] sm:$0xff] %v702
    %895 = vst [vmem:[#allocation2 + $0xb0] sm:$0xff] %v707
    %896 = vst [vmem:[#allocation2 + $0xb8] sm:$0xff] %v710
    %897 = vst [vmem:[#allocation2 + $0xc0] sm:$0xff] %v715
    %898 = vst [vmem:[#allocation2 + $0xc8] sm:$0xff] %v718
    %899 = vst [vmem:[#allocation2 + $0xd0] sm:$0xff] %v723
    %900 = vst [vmem:[#allocation2 + $0xd8] sm:$0xff] %v726
    %901 = vst [vmem:[#allocation2 + $0xe0] sm:$0xff] %v731
    %902 = vst [vmem:[#allocation2 + $0xe8] sm:$0xff] %v734
    %903 = vst [vmem:[#allocation2 + $0xf0] sm:$0xff] %v739
    %904 = vst [vmem:[#allocation2 + $0xf8] sm:$0xff] %v742
    %905 = vst [vmem:[#allocation2 + $0x100] sm:$0xff] %v747
    %906 = vst [vmem:[#allocation2 + $0x108] sm:$0xff] %v750
    %907 = vst [vmem:[#allocation2 + $0x110] sm:$0xff] %v755
    %908 = vst [vmem:[#allocation2 + $0x118] sm:$0xff] %v758
    %909 = vst [vmem:[#allocation2 + $0x120] sm:$0xff] %v763
    %910 = vst [vmem:[#allocation2 + $0x128] sm:$0xff] %v766
    %911 = vst [vmem:[#allocation2 + $0x130] sm:$0xff] %v771
    %912 = vst [vmem:[#allocation2 + $0x138] sm:$0xff] %v774
    %913 = vst [vmem:[#allocation2 + $0x140] sm:$0xff] %v779
    %914 = vst [vmem:[#allocation2 + $0x148] sm:$0xff] %v782
    %915 = vst [vmem:[#allocation2 + $0x150] sm:$0xff] %v787
    %916 = vst [vmem:[#allocation2 + $0x158] sm:$0xff] %v790
    %917 = vst [vmem:[#allocation2 + $0x160] sm:$0xff] %v795
    %918 = vst [vmem:[#allocation2 + $0x168] sm:$0xff] %v798
    %919 = vst [vmem:[#allocation2 + $0x170] sm:$0xff] %v803
    %920 = vst [vmem:[#allocation2 + $0x178] sm:$0xff] %v806
    %921 = vst [vmem:[#allocation2 + $0x180] sm:$0xff] %v811
    %922 = vst [vmem:[#allocation2 + $0x188] sm:$0xff] %v814
    %923 = vst [vmem:[#allocation2 + $0x190] sm:$0xff] %v819
    %924 = vst [vmem:[#allocation2 + $0x198] sm:$0xff] %v822
    %925 = vst [vmem:[#allocation2 + $0x1a0] sm:$0xff] %v827
    %926 = vst [vmem:[#allocation2 + $0x1a8] sm:$0xff] %v830
    %927 = vst [vmem:[#allocation2 + $0x1b0] sm:$0xff] %v835
    %928 = vst [vmem:[#allocation2 + $0x1b8] sm:$0xff] %v838
    %929 = vst [vmem:[#allocation2 + $0x1c0] sm:$0xff] %v843
    %930 = vst [vmem:[#allocation2 + $0x1c8] sm:$0xff] %v846
    %931 = vst [vmem:[#allocation2 + $0x1d0] sm:$0xff] %v851
    %932 = vst [vmem:[#allocation2 + $0x1d8] sm:$0xff] %v854
    %933 = vst [vmem:[#allocation2 + $0x1e0] sm:$0xff] %v859
    %934 = vst [vmem:[#allocation2 + $0x1e8] sm:$0xff] %v862
    %935 = vst [vmem:[#allocation2 + $0x1f0] sm:$0xff] %v867
    %936 = vst [vmem:[#allocation2 + $0x1f8] sm:$0xff] %v870
    // Predicated region
    $region14: #{conv_embedding_forward.1} parent=1 // pred_check
      _
    $region15: #{conv_embedding_forward.1} parent=1 // pred_check_branch
      %938 = sbr.rel (0) target = $region17
    $region16: #{conv_embedding_forward.1} parent=1 // pred_region
      %s940 = ssub.s32 8192, 8192
      %941 = vsyncadd [#allocation3], %s940
      %s942 = sshll.u32 [#allocation2], 4
      %s943 = int_to_ptr.vmem [resolvable:$true] %s942
      %948 = dma.vmem_to_hbm [thread:$0]  %s943, 8192, %s3, [#allocation3], 128, 128, 8
    $region17: #{conv_embedding_forward.1} parent=1 // pred_fallthru
      _
    // Predicated region
    $region18: #{conv_embedding_forward.1} parent=1 // pred_check
      _
    $region19: #{conv_embedding_forward.1} parent=1 // pred_check_branch
      %950 = sbr.rel (0) target = $region21
    $region20: #{conv_embedding_forward.1} parent=1 // pred_region
      %951 = dma.done [#allocation3], 8192
    $region21: #{conv_embedding_forward.1} parent=1 // pred_fallthru
      _
    %952 = vsyncpa [#allocation3], 1

</llo_original>
